<compile_context>
chip_gen: v7x
topology: tpu7x:2x2x1
jax: 0.10.0
libtpu: 0.0.40
codegen_flags: <defaults>
</compile_context>

<pallas_src>
import functools

import jax
import jax.numpy as jnp
from jax.experimental import pallas as pl
from jax.experimental.pallas import tpu as pltpu

EPS = 1e-5  # nn.InstanceNorm2d default (affine=False, biased variance)

# Keep the fused (9*C, bb*HW) im2col patches only while it is small; above this,
# split the contraction into 3 dy row-group matmuls (K = 3*C each).
_FUSED_PATCHES_MAX_BYTES = 2 * 1024 * 1024


def _pick_batch_block(n):
    """Largest bb giving grid >= 4 (else >= 2): v7x megacore split + pipeline depth."""
    for min_grid in (4, 2):
        for bb in (8, 4, 2, 1):
            if n % bb == 0 and n // bb >= min_grid:
                return bb
    return n  # n == 1: single fat block, grid of 1 is unavoidable


def _double_conv_kernel(masks_ref, x_ref, w1_ref, w2_ref, o_ref, *,
                        shifts, bb, HW, split_k):
    # masks_ref: (9, bb*HW) f32  halo-validity masks (1 = in-bounds tap)
    # x_ref    : (Cin_p, bb*HW)  channels on sublanes, batch*spatial on lanes
    # w1_ref   : (Cmid_p, 9*Cin_p)   im2col weights, column order (dy*3+dx)*Cin_p + ci
    # w2_ref   : (Cout,  9*Cmid_p)
    # o_ref    : (Cout, bb*HW)   lane-dense stores
    L = bb * HW
    masks = masks_ref[...]                       # (9, L) f32, loaded once
    w1 = w1_ref[...].astype(jnp.float32)
    w2 = w2_ref[...].astype(jnp.float32)
    # NOTE: for large channel counts cast the matmul *operands* to bf16 (keep f32
    # accumulate and f32 norm math).  On v5e prefer 128-multiples for K / lane-N
    # (vs 256 on v6e/v7x); its VPU/EUP has no native bf16 so keep elementwise in f32.

    def tap(x, t):
        # shifted[:, i] == x[:, i + oy*W + ox]; out-of-image taps (incl. lanes where
        # the roll wraps across an image boundary within the block) forced to 0.
        s = shifts[t]
        shifted = pltpu.roll(x, s, 1) if s else x
        return jnp.where(masks[t:t + 1, :] > 0.5, shifted, jnp.float32(0.0))

    def conv3x3(x, w2d):
        # x: (C, L) f32; zero padding=1 realized by lane rolls + halo masks.
        C = x.shape[0]
        if not split_k:
            patches = jnp.concatenate([tap(x, t) for t in range(9)], axis=0)  # (9C, L)
            return jnp.dot(w2d, patches, preferred_element_type=jnp.float32)
        # Split-K: never materialize the full (9C, L) patches; 3 accumulated matmuls.
        acc = jnp.zeros((w2d.shape[0], L), jnp.float32)
        for dy in range(3):
            patches = jnp.concatenate([tap(x, dy * 3 + dx) for dx in range(3)], axis=0)
            acc = acc + jnp.dot(w2d[:, dy * 3 * C:(dy + 1) * 3 * C], patches,
                                preferred_element_type=jnp.float32)
        return acc

    inv_hw = jnp.float32(1.0 / HW)

    def inorm_relu(y):
        # Per-image InstanceNorm(affine=False) + ReLU, centered two-pass (robust) stats.
        # Static lane slices at multiples of HW (a 128-multiple here) are free.
        outs = []
        for b in range(bb):
            yb = y[:, b * HW:(b + 1) * HW]
            mean = jnp.sum(yb, axis=1, keepdims=True) * inv_hw
            yc = yb - mean
            var = jnp.sum(yc * yc, axis=1, keepdims=True) * inv_hw
            outs.append(jnp.maximum(yc * jax.lax.rsqrt(var + EPS), 0.0))
        return outs[0] if bb == 1 else jnp.concatenate(outs, axis=1)

    x = x_ref[...].astype(jnp.float32)           # (Cin_p, L)
    y1 = inorm_relu(conv3x3(x, w1))              # (Cmid_p, L)
    y2 = inorm_relu(conv3x3(y1, w2))             # (Cout,  L)
    o_ref[...] = y2.astype(o_ref.dtype)


def double_conv(x_nchw, w1, b1, w2, b2, *, batch_block=None, split_k=None):
    """DoubleConv forward.

    x_nchw: (N, Cin, H, W); w1: (3,3,Cin,Cmid) HWIO; w2: (3,3,Cmid,Cout) HWIO.
    b1/b2 accepted for API parity with nn.Conv2d but unused: a per-channel bias is
    cancelled exactly by the following non-affine InstanceNorm's mean subtraction.
    """
    del b1, b2
    N, Cin, H, W = x_nchw.shape
    assert w1.shape[:3] == (3, 3, Cin)
    Cmid, Cout = w1.shape[3], w2.shape[3]
    assert w2.shape[:3] == (3, 3, Cmid)
    HW = H * W

    bb = _pick_batch_block(N) if batch_block is None else batch_block
    assert N % bb == 0
    L = bb * HW

    ceil_to = lambda v, m: -(-v // m) * m
    cin_p = ceil_to(Cin, 8)     # f32 sublane multiple: im2col concat stays layout-only
    cmid_p = ceil_to(Cmid, 8)

    # Channels on sublanes, batch*spatial on lanes (lane-dense loads/stores, no
    # masked vst epilogue).  Wrapper-side transpose is layout plumbing, not compute.
    x_flat = x_nchw.reshape(N, Cin, HW)
    if cin_p != Cin:
        x_flat = jnp.pad(x_flat, ((0, 0), (0, cin_p - Cin), (0, 0)))
    x_2d = jnp.transpose(x_flat, (1, 0, 2)).reshape(cin_p, N * HW)

    # HWIO -> (Cout_, 9*Cin_p), column order (dy*3+dx)*Cin_p + ci; padded channels
    # get zero weights (and padded mid-channels produce identically-zero maps).
    w1p = jnp.pad(w1, ((0, 0), (0, 0), (0, cin_p - Cin), (0, cmid_p - Cmid)))
    w2p = jnp.pad(w2, ((0, 0), (0, 0), (0, cmid_p - Cmid), (0, 0)))
    w1_2d = jnp.transpose(w1p, (3, 0, 1, 2)).reshape(cmid_p, 9 * cin_p)
    w2_2d = jnp.transpose(w2p, (3, 0, 1, 2)).reshape(Cout, 9 * cmid_p)

    # Halo masks + flat lane shifts for the 9 taps, hoisted out of the kernel.
    hh = jnp.arange(HW, dtype=jnp.int32) // W
    ww = jnp.arange(HW, dtype=jnp.int32) % W
    mask_rows, shifts = [], []
    for dy in range(3):
        for dx in range(3):
            oy, ox = dy - 1, dx - 1
            shifts.append((-(oy * W + ox)) % L)
            valid = ((hh + oy >= 0) & (hh + oy < H) &
                     (ww + ox >= 0) & (ww + ox < W)).astype(jnp.float32)
            mask_rows.append(jnp.tile(valid, bb))
    masks = jnp.stack(mask_rows, axis=0)                      # (9, bb*HW)

    if split_k is None:
        split_k = max(9 * cin_p, 9 * cmid_p) * L * 4 > _FUSED_PATCHES_MAX_BYTES

    # TODO(synk): for real UNet feature maps (e.g. C=64, H=W>=128) this whole-image
    # block no longer fits v7x's 64 MiB VMEM: tile H per generation-aware budgets
    # (<~28 MiB/block on v7x, ~2x that on v5e/v6e with vmem_limit_bytes raised) using
    # a two-pass schedule (conv1+stats over all H tiles, then norm+conv2+stats, then
    # norm), since InstanceNorm needs full-image statistics before conv2.
    kernel = functools.partial(_double_conv_kernel, shifts=tuple(shifts),
                               bb=bb, HW=HW, split_k=bool(split_k))
    out_2d = pl.pallas_call(
        kernel,
        out_shape=jax.ShapeDtypeStruct((Cout, N * HW), x_nchw.dtype),
        grid_spec=pltpu.PrefetchScalarGridSpec(
            num_scalar_prefetch=0,
            grid=(N // bb,),
            in_specs=[
                pl.BlockSpec((9, L), lambda n: (0, 0)),               # halo masks
                pl.BlockSpec((cin_p, L), lambda n: (0, n)),           # activations
                pl.BlockSpec((cmid_p, 9 * cin_p), lambda n: (0, 0)),  # conv1 weights
                pl.BlockSpec((Cout, 9 * cmid_p), lambda n: (0, 0)),   # conv2 weights
            ],
            out_specs=pl.BlockSpec((Cout, L), lambda n: (0, n)),
        ),
        compiler_params=pltpu.CompilerParams(
            dimension_semantics=("parallel",)),
    )(masks, x_2d, w1_2d, w2_2d)

    return jnp.transpose(out_2d.reshape(Cout, N, H, W), (1, 0, 2, 3))


def _reference(x, w1, b1, w2, b2):
    """Plain-JAX reference mirroring the PyTorch module (NCHW, biases kept)."""
    def conv(x, w_hwio, b):
        w_oihw = jnp.transpose(w_hwio, (3, 2, 0, 1))
        y = jax.lax.conv_general_dilated(
            x, w_oihw, window_strides=(1, 1), padding=((1, 1), (1, 1)),
            dimension_numbers=("NCHW", "OIHW", "NCHW"))
        return y + b[None, :, None, None]

    def inorm_relu(y):
        m = jnp.mean(y, axis=(2, 3), keepdims=True)
        v = jnp.mean((y - m) ** 2, axis=(2, 3), keepdims=True)
        return jnp.maximum((y - m) / jnp.sqrt(v + EPS), 0.0)

    y = inorm_relu(conv(x, w1, b1))
    return inorm_relu(conv(y, w2, b2))


if __name__ == "__main__":
    # Small shapes consistent with DoubleConv(in_channels=4, out_channels=8)
    N, Cin, H, W = 2, 4, 16, 16
    Cmid = Cout = 8

    key = jax.random.PRNGKey(0)
    kx, kw1, kb1, kw2, kb2 = jax.random.split(key, 5)
    x = jax.random.normal(kx, (N, Cin, H, W), jnp.float32)
    w1 = jax.random.normal(kw1, (3, 3, Cin, Cmid), jnp.float32) * 0.1   # HWIO
    b1 = jax.random.normal(kb1, (Cmid,), jnp.float32) * 0.1
    w2 = jax.random.normal(kw2, (3, 3, Cmid, Cout), jnp.float32) * 0.1  # HWIO
    b2 = jax.random.normal(kb2, (Cout,), jnp.float32) * 0.1

    ref = _reference(x, w1, b1, w2, b2)

    # Default path: bb=1 -> grid=(2,), fused-K im2col matmul per conv.
    out = jax.block_until_ready(double_conv(x, w1, b1, w2, b2))
    assert out.shape == (N, Cout, H, W)
    assert jnp.allclose(out, ref, rtol=2e-4, atol=2e-4), float(
        jnp.max(jnp.abs(out - ref)))

    # Also exercise the batch-folded-into-lanes path and the split-K path.
    out2 = jax.block_until_ready(
        double_conv(x, w1, b1, w2, b2, batch_block=2, split_k=True))
    assert jnp.allclose(out2, ref, rtol=2e-4, atol=2e-4), float(
        jnp.max(jnp.abs(out2 - ref)))

    print("KERNEL_OK")
</pallas_src>

<mosaic_0001>
module attributes {stable_mosaic.version = 11 : i64} {
  func.func @_double_conv_kernel(%arg0: i32, %arg1: memref<9x256xf32, #tpu.memory_space<vmem>>, %arg2: memref<8x256xf32, #tpu.memory_space<vmem>>, %arg3: memref<8x72xf32, #tpu.memory_space<vmem>>, %arg4: memref<8x72xf32, #tpu.memory_space<vmem>>, %arg5: memref<8x256xf32, #tpu.memory_space<vmem>>) attributes {dimension_semantics = [#tpu.dimension_semantics<parallel>], iteration_bounds = array<i64: 2>, scalar_prefetch = 0 : i64, scratch_operands = 0 : i64, tpu.core_type = #tpu.core_type<tc>, window_params = [{pipeline_mode = #tpu.pipeline_mode<synchronous>, transform_indices = @transform_0, window_bounds = array<i64: 9, 256>}, {transform_indices = @transform_1, window_bounds = array<i64: 8, 256>}, {pipeline_mode = #tpu.pipeline_mode<synchronous>, transform_indices = @transform_2, window_bounds = array<i64: 8, 72>}, {pipeline_mode = #tpu.pipeline_mode<synchronous>, transform_indices = @transform_3, window_bounds = array<i64: 8, 72>}, {transform_indices = @transform_4, window_bounds = array<i64: 8, 256>}]} {
    %c0 = arith.constant 0 : index
    %c0_0 = arith.constant 0 : index
    %0 = vector.load %arg1[%c0, %c0_0] : memref<9x256xf32, #tpu.memory_space<vmem>>, vector<9x256xf32>
    %c0_1 = arith.constant 0 : index
    %c0_2 = arith.constant 0 : index
    %1 = vector.load %arg3[%c0_1, %c0_2] : memref<8x72xf32, #tpu.memory_space<vmem>>, vector<8x72xf32>
    %c0_3 = arith.constant 0 : index
    %c0_4 = arith.constant 0 : index
    %2 = vector.load %arg4[%c0_3, %c0_4] : memref<8x72xf32, #tpu.memory_space<vmem>>, vector<8x72xf32>
    %c0_5 = arith.constant 0 : index
    %c0_6 = arith.constant 0 : index
    %3 = vector.load %arg2[%c0_5, %c0_6] : memref<8x256xf32, #tpu.memory_space<vmem>>, vector<8x256xf32>
    %c17_i32 = arith.constant 17 : i32
    %4 = tpu.dynamic_rotate %3 by %c17_i32 dim 1 : vector<8x256xf32>, i32 -> vector<8x256xf32>
    %5 = vector.extract_strided_slice %0 {offsets = [0, 0], sizes = [1, 256], strides = [1, 1]} : vector<9x256xf32> to vector<1x256xf32>
    %cst = arith.constant 5.000000e-01 : f32
    %6 = vector.broadcast %cst : f32 to vector<1x256xf32>
    %7 = arith.cmpf ogt, %5, %6 : vector<1x256xf32>
    %cst_7 = arith.constant 0.000000e+00 : f32
    %8 = vector.shape_cast %7 : vector<1x256xi1> to vector<1x256xi1>
    %9 = vector.broadcast %8 : vector<1x256xi1> to vector<8x256xi1>
    %10 = vector.broadcast %cst_7 : f32 to vector<8x256xf32>
    %11 = arith.select %9, %4, %10 : vector<8x256xi1>, vector<8x256xf32>
    %c16_i32 = arith.constant 16 : i32
    %12 = tpu.dynamic_rotate %3 by %c16_i32 dim 1 : vector<8x256xf32>, i32 -> vector<8x256xf32>
    %13 = vector.extract_strided_slice %0 {offsets = [1, 0], sizes = [1, 256], strides = [1, 1]} : vector<9x256xf32> to vector<1x256xf32>
    %cst_8 = arith.constant 5.000000e-01 : f32
    %14 = vector.broadcast %cst_8 : f32 to vector<1x256xf32>
    %15 = arith.cmpf ogt, %13, %14 : vector<1x256xf32>
    %cst_9 = arith.constant 0.000000e+00 : f32
    %16 = vector.shape_cast %15 : vector<1x256xi1> to vector<1x256xi1>
    %17 = vector.broadcast %16 : vector<1x256xi1> to vector<8x256xi1>
    %18 = vector.broadcast %cst_9 : f32 to vector<8x256xf32>
    %19 = arith.select %17, %12, %18 : vector<8x256xi1>, vector<8x256xf32>
    %c15_i32 = arith.constant 15 : i32
    %20 = tpu.dynamic_rotate %3 by %c15_i32 dim 1 : vector<8x256xf32>, i32 -> vector<8x256xf32>
    %21 = vector.extract_strided_slice %0 {offsets = [2, 0], sizes = [1, 256], strides = [1, 1]} : vector<9x256xf32> to vector<1x256xf32>
    %cst_10 = arith.constant 5.000000e-01 : f32
    %22 = vector.broadcast %cst_10 : f32 to vector<1x256xf32>
    %23 = arith.cmpf ogt, %21, %22 : vector<1x256xf32>
    %cst_11 = arith.constant 0.000000e+00 : f32
    %24 = vector.shape_cast %23 : vector<1x256xi1> to vector<1x256xi1>
    %25 = vector.broadcast %24 : vector<1x256xi1> to vector<8x256xi1>
    %26 = vector.broadcast %cst_11 : f32 to vector<8x256xf32>
    %27 = arith.select %25, %20, %26 : vector<8x256xi1>, vector<8x256xf32>
    %c1_i32 = arith.constant 1 : i32
    %28 = tpu.dynamic_rotate %3 by %c1_i32 dim 1 : vector<8x256xf32>, i32 -> vector<8x256xf32>
    %29 = vector.extract_strided_slice %0 {offsets = [3, 0], sizes = [1, 256], strides = [1, 1]} : vector<9x256xf32> to vector<1x256xf32>
    %cst_12 = arith.constant 5.000000e-01 : f32
    %30 = vector.broadcast %cst_12 : f32 to vector<1x256xf32>
    %31 = arith.cmpf ogt, %29, %30 : vector<1x256xf32>
    %cst_13 = arith.constant 0.000000e+00 : f32
    %32 = vector.shape_cast %31 : vector<1x256xi1> to vector<1x256xi1>
    %33 = vector.broadcast %32 : vector<1x256xi1> to vector<8x256xi1>
    %34 = vector.broadcast %cst_13 : f32 to vector<8x256xf32>
    %35 = arith.select %33, %28, %34 : vector<8x256xi1>, vector<8x256xf32>
    %36 = vector.extract_strided_slice %0 {offsets = [4, 0], sizes = [1, 256], strides = [1, 1]} : vector<9x256xf32> to vector<1x256xf32>
    %cst_14 = arith.constant 5.000000e-01 : f32
    %37 = vector.broadcast %cst_14 : f32 to vector<1x256xf32>
    %38 = arith.cmpf ogt, %36, %37 : vector<1x256xf32>
    %cst_15 = arith.constant 0.000000e+00 : f32
    %39 = vector.shape_cast %38 : vector<1x256xi1> to vector<1x256xi1>
    %40 = vector.broadcast %39 : vector<1x256xi1> to vector<8x256xi1>
    %41 = vector.broadcast %cst_15 : f32 to vector<8x256xf32>
    %42 = arith.select %40, %3, %41 : vector<8x256xi1>, vector<8x256xf32>
    %c255_i32 = arith.constant 255 : i32
    %43 = tpu.dynamic_rotate %3 by %c255_i32 dim 1 : vector<8x256xf32>, i32 -> vector<8x256xf32>
    %44 = vector.extract_strided_slice %0 {offsets = [5, 0], sizes = [1, 256], strides = [1, 1]} : vector<9x256xf32> to vector<1x256xf32>
    %cst_16 = arith.constant 5.000000e-01 : f32
    %45 = vector.broadcast %cst_16 : f32 to vector<1x256xf32>
    %46 = arith.cmpf ogt, %44, %45 : vector<1x256xf32>
    %cst_17 = arith.constant 0.000000e+00 : f32
    %47 = vector.shape_cast %46 : vector<1x256xi1> to vector<1x256xi1>
    %48 = vector.broadcast %47 : vector<1x256xi1> to vector<8x256xi1>
    %49 = vector.broadcast %cst_17 : f32 to vector<8x256xf32>
    %50 = arith.select %48, %43, %49 : vector<8x256xi1>, vector<8x256xf32>
    %c241_i32 = arith.constant 241 : i32
    %51 = tpu.dynamic_rotate %3 by %c241_i32 dim 1 : vector<8x256xf32>, i32 -> vector<8x256xf32>
    %52 = vector.extract_strided_slice %0 {offsets = [6, 0], sizes = [1, 256], strides = [1, 1]} : vector<9x256xf32> to vector<1x256xf32>
    %cst_18 = arith.constant 5.000000e-01 : f32
    %53 = vector.broadcast %cst_18 : f32 to vector<1x256xf32>
    %54 = arith.cmpf ogt, %52, %53 : vector<1x256xf32>
    %cst_19 = arith.constant 0.000000e+00 : f32
    %55 = vector.shape_cast %54 : vector<1x256xi1> to vector<1x256xi1>
    %56 = vector.broadcast %55 : vector<1x256xi1> to vector<8x256xi1>
    %57 = vector.broadcast %cst_19 : f32 to vector<8x256xf32>
    %58 = arith.select %56, %51, %57 : vector<8x256xi1>, vector<8x256xf32>
    %c240_i32 = arith.constant 240 : i32
    %59 = tpu.dynamic_rotate %3 by %c240_i32 dim 1 : vector<8x256xf32>, i32 -> vector<8x256xf32>
    %60 = vector.extract_strided_slice %0 {offsets = [7, 0], sizes = [1, 256], strides = [1, 1]} : vector<9x256xf32> to vector<1x256xf32>
    %cst_20 = arith.constant 5.000000e-01 : f32
    %61 = vector.broadcast %cst_20 : f32 to vector<1x256xf32>
    %62 = arith.cmpf ogt, %60, %61 : vector<1x256xf32>
    %cst_21 = arith.constant 0.000000e+00 : f32
    %63 = vector.shape_cast %62 : vector<1x256xi1> to vector<1x256xi1>
    %64 = vector.broadcast %63 : vector<1x256xi1> to vector<8x256xi1>
    %65 = vector.broadcast %cst_21 : f32 to vector<8x256xf32>
    %66 = arith.select %64, %59, %65 : vector<8x256xi1>, vector<8x256xf32>
    %c239_i32 = arith.constant 239 : i32
    %67 = tpu.dynamic_rotate %3 by %c239_i32 dim 1 : vector<8x256xf32>, i32 -> vector<8x256xf32>
    %68 = vector.extract_strided_slice %0 {offsets = [8, 0], sizes = [1, 256], strides = [1, 1]} : vector<9x256xf32> to vector<1x256xf32>
    %cst_22 = arith.constant 5.000000e-01 : f32
    %69 = vector.broadcast %cst_22 : f32 to vector<1x256xf32>
    %70 = arith.cmpf ogt, %68, %69 : vector<1x256xf32>
    %cst_23 = arith.constant 0.000000e+00 : f32
    %71 = vector.shape_cast %70 : vector<1x256xi1> to vector<1x256xi1>
    %72 = vector.broadcast %71 : vector<1x256xi1> to vector<8x256xi1>
    %73 = vector.broadcast %cst_23 : f32 to vector<8x256xf32>
    %74 = arith.select %72, %67, %73 : vector<8x256xi1>, vector<8x256xf32>
    %75 = tpu.concatenate %11, %19, %27, %35, %42, %50, %58, %66, %74 in 0 : vector<8x256xf32>, vector<8x256xf32>, vector<8x256xf32>, vector<8x256xf32>, vector<8x256xf32>, vector<8x256xf32>, vector<8x256xf32>, vector<8x256xf32>, vector<8x256xf32> -> vector<72x256xf32>
    %cst_24 = arith.constant dense<0.000000e+00> : vector<8x256xf32>
    %76 = tpu.matmul %1, %75, %cst_24 {dimension_numbers = #tpu.dot_dimension_numbers<[1], [0], [0], [1], [0, 0, 1, 1], [], []>} : vector<8x72xf32>, vector<72x256xf32>, vector<8x256xf32> -> vector<8x256xf32>
    %cst_25 = arith.constant dense<0.000000e+00> : vector<8xf32>
    %77 = vector.multi_reduction <add>, %76, %cst_25 [1] : vector<8x256xf32> to vector<8xf32>
    %78 = vector.shape_cast %77 : vector<8xf32> to vector<8x1xf32>
    %cst_26 = arith.constant 3.906250e-03 : f32
    %79 = vector.broadcast %cst_26 : f32 to vector<8x1xf32>
    %80 = arith.mulf %78, %79 : vector<8x1xf32>
    %81 = vector.broadcast %80 : vector<8x1xf32> to vector<8x256xf32>
    %82 = arith.subf %76, %81 : vector<8x256xf32>
    %83 = arith.mulf %82, %82 : vector<8x256xf32>
    %cst_27 = arith.constant dense<0.000000e+00> : vector<8xf32>
    %84 = vector.multi_reduction <add>, %83, %cst_27 [1] : vector<8x256xf32> to vector<8xf32>
    %85 = vector.shape_cast %84 : vector<8xf32> to vector<8x1xf32>
    %cst_28 = arith.constant 3.906250e-03 : f32
    %86 = vector.broadcast %cst_28 : f32 to vector<8x1xf32>
    %87 = arith.mulf %85, %86 : vector<8x1xf32>
    %cst_29 = arith.constant 9.99999974E-6 : f32
    %88 = vector.broadcast %cst_29 : f32 to vector<8x1xf32>
    %89 = arith.addf %87, %88 : vector<8x1xf32>
    %90 = math.rsqrt %89 : vector<8x1xf32>
    %91 = vector.broadcast %90 : vector<8x1xf32> to vector<8x256xf32>
    %92 = arith.mulf %82, %91 : vector<8x256xf32>
    %cst_30 = arith.constant 0.000000e+00 : f32
    %93 = vector.broadcast %cst_30 : f32 to vector<8x256xf32>
    %94 = arith.maximumf %92, %93 : vector<8x256xf32>
    %c17_i32_31 = arith.constant 17 : i32
    %95 = tpu.dynamic_rotate %94 by %c17_i32_31 dim 1 : vector<8x256xf32>, i32 -> vector<8x256xf32>
    %96 = vector.extract_strided_slice %0 {offsets = [0, 0], sizes = [1, 256], strides = [1, 1]} : vector<9x256xf32> to vector<1x256xf32>
    %cst_32 = arith.constant 5.000000e-01 : f32
    %97 = vector.broadcast %cst_32 : f32 to vector<1x256xf32>
    %98 = arith.cmpf ogt, %96, %97 : vector<1x256xf32>
    %cst_33 = arith.constant 0.000000e+00 : f32
    %99 = vector.shape_cast %98 : vector<1x256xi1> to vector<1x256xi1>
    %100 = vector.broadcast %99 : vector<1x256xi1> to vector<8x256xi1>
    %101 = vector.broadcast %cst_33 : f32 to vector<8x256xf32>
    %102 = arith.select %100, %95, %101 : vector<8x256xi1>, vector<8x256xf32>
    %c16_i32_34 = arith.constant 16 : i32
    %103 = tpu.dynamic_rotate %94 by %c16_i32_34 dim 1 : vector<8x256xf32>, i32 -> vector<8x256xf32>
    %104 = vector.extract_strided_slice %0 {offsets = [1, 0], sizes = [1, 256], strides = [1, 1]} : vector<9x256xf32> to vector<1x256xf32>
    %cst_35 = arith.constant 5.000000e-01 : f32
    %105 = vector.broadcast %cst_35 : f32 to vector<1x256xf32>
    %106 = arith.cmpf ogt, %104, %105 : vector<1x256xf32>
    %cst_36 = arith.constant 0.000000e+00 : f32
    %107 = vector.shape_cast %106 : vector<1x256xi1> to vector<1x256xi1>
    %108 = vector.broadcast %107 : vector<1x256xi1> to vector<8x256xi1>
    %109 = vector.broadcast %cst_36 : f32 to vector<8x256xf32>
    %110 = arith.select %108, %103, %109 : vector<8x256xi1>, vector<8x256xf32>
    %c15_i32_37 = arith.constant 15 : i32
    %111 = tpu.dynamic_rotate %94 by %c15_i32_37 dim 1 : vector<8x256xf32>, i32 -> vector<8x256xf32>
    %112 = vector.extract_strided_slice %0 {offsets = [2, 0], sizes = [1, 256], strides = [1, 1]} : vector<9x256xf32> to vector<1x256xf32>
    %cst_38 = arith.constant 5.000000e-01 : f32
    %113 = vector.broadcast %cst_38 : f32 to vector<1x256xf32>
    %114 = arith.cmpf ogt, %112, %113 : vector<1x256xf32>
    %cst_39 = arith.constant 0.000000e+00 : f32
    %115 = vector.shape_cast %114 : vector<1x256xi1> to vector<1x256xi1>
    %116 = vector.broadcast %115 : vector<1x256xi1> to vector<8x256xi1>
    %117 = vector.broadcast %cst_39 : f32 to vector<8x256xf32>
    %118 = arith.select %116, %111, %117 : vector<8x256xi1>, vector<8x256xf32>
    %c1_i32_40 = arith.constant 1 : i32
    %119 = tpu.dynamic_rotate %94 by %c1_i32_40 dim 1 : vector<8x256xf32>, i32 -> vector<8x256xf32>
    %120 = vector.extract_strided_slice %0 {offsets = [3, 0], sizes = [1, 256], strides = [1, 1]} : vector<9x256xf32> to vector<1x256xf32>
    %cst_41 = arith.constant 5.000000e-01 : f32
    %121 = vector.broadcast %cst_41 : f32 to vector<1x256xf32>
    %122 = arith.cmpf ogt, %120, %121 : vector<1x256xf32>
    %cst_42 = arith.constant 0.000000e+00 : f32
    %123 = vector.shape_cast %122 : vector<1x256xi1> to vector<1x256xi1>
    %124 = vector.broadcast %123 : vector<1x256xi1> to vector<8x256xi1>
    %125 = vector.broadcast %cst_42 : f32 to vector<8x256xf32>
    %126 = arith.select %124, %119, %125 : vector<8x256xi1>, vector<8x256xf32>
    %127 = vector.extract_strided_slice %0 {offsets = [4, 0], sizes = [1, 256], strides = [1, 1]} : vector<9x256xf32> to vector<1x256xf32>
    %cst_43 = arith.constant 5.000000e-01 : f32
    %128 = vector.broadcast %cst_43 : f32 to vector<1x256xf32>
    %129 = arith.cmpf ogt, %127, %128 : vector<1x256xf32>
    %cst_44 = arith.constant 0.000000e+00 : f32
    %130 = vector.shape_cast %129 : vector<1x256xi1> to vector<1x256xi1>
    %131 = vector.broadcast %130 : vector<1x256xi1> to vector<8x256xi1>
    %132 = vector.broadcast %cst_44 : f32 to vector<8x256xf32>
    %133 = arith.select %131, %94, %132 : vector<8x256xi1>, vector<8x256xf32>
    %c255_i32_45 = arith.constant 255 : i32
    %134 = tpu.dynamic_rotate %94 by %c255_i32_45 dim 1 : vector<8x256xf32>, i32 -> vector<8x256xf32>
    %135 = vector.extract_strided_slice %0 {offsets = [5, 0], sizes = [1, 256], strides = [1, 1]} : vector<9x256xf32> to vector<1x256xf32>
    %cst_46 = arith.constant 5.000000e-01 : f32
    %136 = vector.broadcast %cst_46 : f32 to vector<1x256xf32>
    %137 = arith.cmpf ogt, %135, %136 : vector<1x256xf32>
    %cst_47 = arith.constant 0.000000e+00 : f32
    %138 = vector.shape_cast %137 : vector<1x256xi1> to vector<1x256xi1>
    %139 = vector.broadcast %138 : vector<1x256xi1> to vector<8x256xi1>
    %140 = vector.broadcast %cst_47 : f32 to vector<8x256xf32>
    %141 = arith.select %139, %134, %140 : vector<8x256xi1>, vector<8x256xf32>
    %c241_i32_48 = arith.constant 241 : i32
    %142 = tpu.dynamic_rotate %94 by %c241_i32_48 dim 1 : vector<8x256xf32>, i32 -> vector<8x256xf32>
    %143 = vector.extract_strided_slice %0 {offsets = [6, 0], sizes = [1, 256], strides = [1, 1]} : vector<9x256xf32> to vector<1x256xf32>
    %cst_49 = arith.constant 5.000000e-01 : f32
    %144 = vector.broadcast %cst_49 : f32 to vector<1x256xf32>
    %145 = arith.cmpf ogt, %143, %144 : vector<1x256xf32>
    %cst_50 = arith.constant 0.000000e+00 : f32
    %146 = vector.shape_cast %145 : vector<1x256xi1> to vector<1x256xi1>
    %147 = vector.broadcast %146 : vector<1x256xi1> to vector<8x256xi1>
    %148 = vector.broadcast %cst_50 : f32 to vector<8x256xf32>
    %149 = arith.select %147, %142, %148 : vector<8x256xi1>, vector<8x256xf32>
    %c240_i32_51 = arith.constant 240 : i32
    %150 = tpu.dynamic_rotate %94 by %c240_i32_51 dim 1 : vector<8x256xf32>, i32 -> vector<8x256xf32>
    %151 = vector.extract_strided_slice %0 {offsets = [7, 0], sizes = [1, 256], strides = [1, 1]} : vector<9x256xf32> to vector<1x256xf32>
    %cst_52 = arith.constant 5.000000e-01 : f32
    %152 = vector.broadcast %cst_52 : f32 to vector<1x256xf32>
    %153 = arith.cmpf ogt, %151, %152 : vector<1x256xf32>
    %cst_53 = arith.constant 0.000000e+00 : f32
    %154 = vector.shape_cast %153 : vector<1x256xi1> to vector<1x256xi1>
    %155 = vector.broadcast %154 : vector<1x256xi1> to vector<8x256xi1>
    %156 = vector.broadcast %cst_53 : f32 to vector<8x256xf32>
    %157 = arith.select %155, %150, %156 : vector<8x256xi1>, vector<8x256xf32>
    %c239_i32_54 = arith.constant 239 : i32
    %158 = tpu.dynamic_rotate %94 by %c239_i32_54 dim 1 : vector<8x256xf32>, i32 -> vector<8x256xf32>
    %159 = vector.extract_strided_slice %0 {offsets = [8, 0], sizes = [1, 256], strides = [1, 1]} : vector<9x256xf32> to vector<1x256xf32>
    %cst_55 = arith.constant 5.000000e-01 : f32
    %160 = vector.broadcast %cst_55 : f32 to vector<1x256xf32>
    %161 = arith.cmpf ogt, %159, %160 : vector<1x256xf32>
    %cst_56 = arith.constant 0.000000e+00 : f32
    %162 = vector.shape_cast %161 : vector<1x256xi1> to vector<1x256xi1>
    %163 = vector.broadcast %162 : vector<1x256xi1> to vector<8x256xi1>
    %164 = vector.broadcast %cst_56 : f32 to vector<8x256xf32>
    %165 = arith.select %163, %158, %164 : vector<8x256xi1>, vector<8x256xf32>
    %166 = tpu.concatenate %102, %110, %118, %126, %133, %141, %149, %157, %165 in 0 : vector<8x256xf32>, vector<8x256xf32>, vector<8x256xf32>, vector<8x256xf32>, vector<8x256xf32>, vector<8x256xf32>, vector<8x256xf32>, vector<8x256xf32>, vector<8x256xf32> -> vector<72x256xf32>
    %cst_57 = arith.constant dense<0.000000e+00> : vector<8x256xf32>
    %167 = tpu.matmul %2, %166, %cst_57 {dimension_numbers = #tpu.dot_dimension_numbers<[1], [0], [0], [1], [0, 0, 1, 1], [], []>} : vector<8x72xf32>, vector<72x256xf32>, vector<8x256xf32> -> vector<8x256xf32>
    %cst_58 = arith.constant dense<0.000000e+00> : vector<8xf32>
    %168 = vector.multi_reduction <add>, %167, %cst_58 [1] : vector<8x256xf32> to vector<8xf32>
    %169 = vector.shape_cast %168 : vector<8xf32> to vector<8x1xf32>
    %cst_59 = arith.constant 3.906250e-03 : f32
    %170 = vector.broadcast %cst_59 : f32 to vector<8x1xf32>
    %171 = arith.mulf %169, %170 : vector<8x1xf32>
    %172 = vector.broadcast %171 : vector<8x1xf32> to vector<8x256xf32>
    %173 = arith.subf %167, %172 : vector<8x256xf32>
    %174 = arith.mulf %173, %173 : vector<8x256xf32>
    %cst_60 = arith.constant dense<0.000000e+00> : vector<8xf32>
    %175 = vector.multi_reduction <add>, %174, %cst_60 [1] : vector<8x256xf32> to vector<8xf32>
    %176 = vector.shape_cast %175 : vector<8xf32> to vector<8x1xf32>
    %cst_61 = arith.constant 3.906250e-03 : f32
    %177 = vector.broadcast %cst_61 : f32 to vector<8x1xf32>
    %178 = arith.mulf %176, %177 : vector<8x1xf32>
    %cst_62 = arith.constant 9.99999974E-6 : f32
    %179 = vector.broadcast %cst_62 : f32 to vector<8x1xf32>
    %180 = arith.addf %178, %179 : vector<8x1xf32>
    %181 = math.rsqrt %180 : vector<8x1xf32>
    %182 = vector.broadcast %181 : vector<8x1xf32> to vector<8x256xf32>
    %183 = arith.mulf %173, %182 : vector<8x256xf32>
    %cst_63 = arith.constant 0.000000e+00 : f32
    %184 = vector.broadcast %cst_63 : f32 to vector<8x256xf32>
    %185 = arith.maximumf %183, %184 : vector<8x256xf32>
    %c0_64 = arith.constant 0 : index
    %c0_65 = arith.constant 0 : index
    %186 = vector.load %arg5[%c0_64, %c0_65] : memref<8x256xf32, #tpu.memory_space<vmem>>, vector<8x256xf32>
    tpu.vector_store %arg5[%c0_64, %c0_65], %185 {strides = array<i32>} : memref<8x256xf32, #tpu.memory_space<vmem>>, vector<8x256xf32>,
    return
  }
  func.func @transform_0(%arg0: i32) -> (i32, i32) {
    %c0_i32 = arith.constant 0 : i32
    %c0_i32_0 = arith.constant 0 : i32
    %c0_i32_1 = arith.constant 0 : i32
    return %c0_i32, %c0_i32_0 : i32, i32
  }
  func.func @transform_1(%arg0: i32) -> (i32, i32) {
    %c0_i32 = arith.constant 0 : i32
    %c0_i32_0 = arith.constant 0 : i32
    return %c0_i32, %arg0 : i32, i32
  }
  func.func @transform_2(%arg0: i32) -> (i32, i32) {
    %c0_i32 = arith.constant 0 : i32
    %c0_i32_0 = arith.constant 0 : i32
    %c0_i32_1 = arith.constant 0 : i32
    return %c0_i32, %c0_i32_0 : i32, i32
  }
  func.func @transform_3(%arg0: i32) -> (i32, i32) {
    %c0_i32 = arith.constant 0 : i32
    %c0_i32_0 = arith.constant 0 : i32
    %c0_i32_1 = arith.constant 0 : i32
    return %c0_i32, %c0_i32_0 : i32, i32
  }
  func.func @transform_4(%arg0: i32) -> (i32, i32) {
    %c0_i32 = arith.constant 0 : i32
    %c0_i32_0 = arith.constant 0 : i32
    return %c0_i32, %arg0 : i32, i32
  }
}

</mosaic_0001>

<llo_original>
// kernel: tpu_custom_call.1
$region0: #{tpu_custom_call.1}
  #allocation0 [shape = 'u32[]', space=smem, size = 0x4, offset = 0x4, fixed_abs, tag = 'smem constant byte address 0x4 - core index']
  #allocation1 [shape = 'u32[144,128]{1,0:T(1,128)}', space=vmem, size = 0x12000, scoped, tag = 'internal scratch']
  %s0 = inlined_call_operand.hbm [shape: f32[9,256], index: 0, kind: input, shape index: {}]
  %s1 = inlined_call_operand.hbm [shape: f32[8,512], index: 1, kind: input, shape index: {}]
  %s2 = inlined_call_operand.hbm [shape: f32[8,72], index: 2, kind: input, shape index: {}]
  %s3 = inlined_call_operand.vmem [shape: f32[8,72], index: 3, kind: input, shape index: {}]
  %s4 = inlined_call_operand.hbm [shape: f32[8,512], index: 4, kind: output, shape index: {}]
  %s5 = sld [smem:[#allocation0]]
  $region61: #{tpu_custom_call.1} parent=0
    _
  %s7 = ssub.s32 1, %s5
  %s8 = scalar_select 0, %s7, %s5
  $region1: #{tpu_custom_call.1} parent=0
    #allocation2 [shape = 'u8[16384]{0}', space=vmem, size = 0x4000, scoped, tag = 'input window, operand 0, single buffered']
    #allocation3 [shape = 's32[2]{0}', space=sflag, size = 0x8, scoped, tag = 'scoped memory for tpu_custom_call.1']
    #allocation4 [shape = 's32[2]{0}', space=sflag, size = 0x8, scoped, tag = 'scoped memory for tpu_custom_call.1']
    #allocation5 [shape = 'u8[16384]{0}', space=vmem, size = 0x4000, scoped, tag = 'input window, operand 1']
    #allocation6 [shape = 's32[2]{0}', space=sflag, size = 0x8, scoped, tag = 'scoped memory for tpu_custom_call.1']
    #allocation7 [shape = 'u8[4096]{0}', space=vmem, size = 0x1000, scoped, tag = 'input window, operand 2, single buffered']
    #allocation8 [shape = 'u8[16384]{0}', space=vmem, size = 0x4000, scoped, tag = 'output window, operand 0']
    %9 = vsyncpa [#allocation3], 0
    %10 = vsyncpa [#allocation6], 0
    %s11 = scalar_lea.sflag [#allocation6], 1
    %12 = vsyncpa %s11, 0
    %13 = vsyncpa [#allocation4], 0
    %s14 = scalar_lea.sflag [#allocation4], 1
    %15 = vsyncpa %s14, 0
    loop: start=0, step=1, limit=4
    $region2: #{tpu_custom_call.1} parent=1 // loop_pre_header
      _
    $region3: #{tpu_custom_call.1} parent=1 // loop_header
      %s17 = sphi 0, %s21
      %p18 = scmp.ge.s32.totalorder %s17, 4
      %s25 = sphi 0, %s25
      %s27 = sphi 0, %s25
      %s28 = sphi 0, %s27
      %s42 = sphi 0, %s28
      %s48 = sphi 0, %s50
      %s51 = sphi 0, %s48
      %s52 = sphi 0, %s51
      %s68 = sphi 0, %s52
      %s72 = sphi 0, %s72
      %s74 = sphi 0, %s72
      %s75 = sphi 0, %s74
      %s89 = sphi 0, %s75
      %s93 = sphi 0, %s93
      %s95 = sphi 0, %s93
      %s96 = sphi 0, %s95
      %s110 = sphi 0, %s96
      %s116 = sphi 0, %s118
      %s119 = sphi 0, %s116
      %s120 = sphi 0, %s119
      %s136 = sphi 0, %s120
    $region4: #{tpu_custom_call.1} parent=1 // loop_header_branch
      %20 = sbr.rel (%p18) target = $region8
    $region5: #{tpu_custom_call.1} parent=1 // loop_body
      %s22 = ssub.s32 %s17, 1
      %s23 = ssub.s32 %s17, 2
      %s24 = sadd.s32 %s17, 1
      %s26 = sadd.s32 %s25, 1
      %p29 = scmp.eq.s32.totalorder %s17, 1
      %p30 = scmp.ne.s32.totalorder %s25, %s27
      %p31 = scmp.eq.s32.totalorder %s17, 0
      %p32 = por %p30, %p31
      %p33 = scmp.ne.s32.totalorder %s25, %s27
      %p34 = scmp.eq.s32.totalorder %s22, 1
      %p35 = por %p33, %p34
      %p36 = scmp.ne.s32.totalorder %s27, %s28
      %p37 = scmp.eq.s32.totalorder %s22, 0
      %p38 = por %p36, %p37
      %p39 = scmp.ne.s32.totalorder %s27, %s28
      %p40 = scmp.eq.s32.totalorder %s23, 1
      %p41 = por %p39, %p40
      %p43 = scmp.ne.s32.totalorder %s28, %s42
      %p44 = scmp.eq.s32.totalorder %s23, 0
      %p45 = por %p43, %p44
      %s46 = ssub.s32 %s17, %s24
      %p47 = scmp.eq.s32.totalorder %s46, 0
      %s49 = sadd.s32 %s48, 1
      %s50 = scalar_select %p47, %s48, %s49
      %p53 = pneg %p47
      %p54 = scmp.eq.s32.totalorder %s17, 1
      %p55 = por %p53, %p54
      %p56 = scmp.ne.s32.totalorder %s48, %s51
      %p57 = scmp.eq.s32.totalorder %s17, 0
      %p58 = por %p56, %p57
      %p59 = scmp.ne.s32.totalorder %s48, %s51
      %p60 = scmp.eq.s32.totalorder %s22, 1
      %p61 = por %p59, %p60
      %p62 = scmp.ne.s32.totalorder %s51, %s52
      %p63 = scmp.eq.s32.totalorder %s22, 0
      %p64 = por %p62, %p63
      %p65 = scmp.ne.s32.totalorder %s51, %s52
      %p66 = scmp.eq.s32.totalorder %s23, 1
      %p67 = por %p65, %p66
      %p69 = scmp.ne.s32.totalorder %s52, %s68
      %p70 = scmp.eq.s32.totalorder %s23, 0
      %p71 = por %p69, %p70
      %s73 = sadd.s32 %s72, 1
      %p76 = scmp.eq.s32.totalorder %s17, 1
      %p77 = scmp.ne.s32.totalorder %s72, %s74
      %p78 = scmp.eq.s32.totalorder %s17, 0
      %p79 = por %p77, %p78
      %p80 = scmp.ne.s32.totalorder %s72, %s74
      %p81 = scmp.eq.s32.totalorder %s22, 1
      %p82 = por %p80, %p81
      %p83 = scmp.ne.s32.totalorder %s74, %s75
      %p84 = scmp.eq.s32.totalorder %s22, 0
      %p85 = por %p83, %p84
      %p86 = scmp.ne.s32.totalorder %s74, %s75
      %p87 = scmp.eq.s32.totalorder %s23, 1
      %p88 = por %p86, %p87
      %p90 = scmp.ne.s32.totalorder %s75, %s89
      %p91 = scmp.eq.s32.totalorder %s23, 0
      %p92 = por %p90, %p91
      %s94 = sadd.s32 %s93, 1
      %p97 = scmp.eq.s32.totalorder %s17, 1
      %p98 = scmp.ne.s32.totalorder %s93, %s95
      %p99 = scmp.eq.s32.totalorder %s17, 0
      %p100 = por %p98, %p99
      %p101 = scmp.ne.s32.totalorder %s93, %s95
      %p102 = scmp.eq.s32.totalorder %s22, 1
      %p103 = por %p101, %p102
      %p104 = scmp.ne.s32.totalorder %s95, %s96
      %p105 = scmp.eq.s32.totalorder %s22, 0
      %p106 = por %p104, %p105
      %p107 = scmp.ne.s32.totalorder %s95, %s96
      %p108 = scmp.eq.s32.totalorder %s23, 1
      %p109 = por %p107, %p108
      %p111 = scmp.ne.s32.totalorder %s96, %s110
      %p112 = scmp.eq.s32.totalorder %s23, 0
      %p113 = por %p111, %p112
      %s114 = ssub.s32 %s17, %s24
      %p115 = scmp.eq.s32.totalorder %s114, 0
      %s117 = sadd.s32 %s116, 1
      %s118 = scalar_select %p115, %s116, %s117
      %p121 = pneg %p115
      %p122 = scmp.eq.s32.totalorder %s17, 1
      %p123 = por %p121, %p122
      %p124 = scmp.ne.s32.totalorder %s116, %s119
      %p125 = scmp.eq.s32.totalorder %s17, 0
      %p126 = por %p124, %p125
      %p127 = scmp.ne.s32.totalorder %s116, %s119
      %p128 = scmp.eq.s32.totalorder %s22, 1
      %p129 = por %p127, %p128
      %p130 = scmp.ne.s32.totalorder %s119, %s120
      %p131 = scmp.eq.s32.totalorder %s22, 0
      %p132 = por %p130, %p131
      %p133 = scmp.ne.s32.totalorder %s119, %s120
      %p134 = scmp.eq.s32.totalorder %s23, 1
      %p135 = por %p133, %p134
      %p137 = scmp.ne.s32.totalorder %s120, %s136
      %p138 = scmp.eq.s32.totalorder %s23, 0
      %p139 = por %p137, %p138
      %p140 = scmp.le.s32.totalorder 1, %s17
      %p141 = scmp.lt.s32.totalorder %s17, 3
      %p142 = pnand %p140, %p141
      %p143 = pneg %p142
      // Predicated region
      $region9: #{tpu_custom_call.1} parent=5 // pred_check
        _
      $region10: #{tpu_custom_call.1} parent=5 // pred_check_branch
        %145 = sbr.rel (%p142) target = $region12
      $region11: #{tpu_custom_call.1} parent=5 // pred_region
        %s146 = ssub.s32 %s17, 1
        // Predicated region
        $region13: #{tpu_custom_call.1} parent=11 // pred_check
          %p147 = pneg %p38
        $region14: #{tpu_custom_call.1} parent=11 // pred_check_branch
          %149 = sbr.rel (%p147) target = $region16
        $region15: #{tpu_custom_call.1} parent=11 // pred_region
          %s151 = ssub.s32 512, 512
          %152 = vsyncadd [#allocation3], %s151
          %s153 = sshll.u32 [#allocation2], 4
          %s154 = int_to_ptr.vmem [resolvable:$true] %s153
          %159 = dma.hbm_to_vmem [thread:$0]  %s0, 512, %s154, [#allocation3], 256, 256, 16
        $region16: #{tpu_custom_call.1} parent=11 // pred_fallthru
          _
        // Predicated region
        $region17: #{tpu_custom_call.1} parent=11 // pred_check
          %p160 = pneg %p85
        $region18: #{tpu_custom_call.1} parent=11 // pred_check_branch
          %162 = sbr.rel (%p160) target = $region20
        $region19: #{tpu_custom_call.1} parent=11 // pred_region
          %s164 = ssub.s32 128, 128
          %165 = vsyncadd [#allocation6], %s164
          %s167 = sshll.u32 [#allocation7], 4
          %s168 = int_to_ptr.vmem [resolvable:$true] %s167
          %170 = dma.hbm_to_vmem [thread:$0]  %s2, 128, %s168, [#allocation6]
        $region20: #{tpu_custom_call.1} parent=11 // pred_fallthru
          _
        // Predicated region
        $region21: #{tpu_custom_call.1} parent=11 // pred_check
          %p171 = pneg %p106
        $region22: #{tpu_custom_call.1} parent=11 // pred_check_branch
          %173 = sbr.rel (%p171) target = $region24
        $region23: #{tpu_custom_call.1} parent=11 // pred_region
          _
        $region24: #{tpu_custom_call.1} parent=11 // pred_fallthru
          _
      $region12: #{tpu_custom_call.1} parent=5 // pred_fallthru
        _
      %p174 = scmp.lt.s32.totalorder %s17, 2
      // Predicated region
      $region25: #{tpu_custom_call.1} parent=5 // pred_check
        %p175 = pneg %p174
      $region26: #{tpu_custom_call.1} parent=5 // pred_check_branch
        %177 = sbr.rel (%p175) target = $region28
      $region27: #{tpu_custom_call.1} parent=5 // pred_region
        // Predicated region
        $region29: #{tpu_custom_call.1} parent=27 // pred_check
          %p178 = pneg %p58
        $region30: #{tpu_custom_call.1} parent=27 // pred_check_branch
          %180 = sbr.rel (%p178) target = $region32
        $region31: #{tpu_custom_call.1} parent=27 // pred_region
          %s181 = sand.u32 %s17, 1
          %s182 = scalar_lea.sflag [#allocation6], %s181
          %s183 = sand.u32 %s48, 1
          %s184 = smul.addr %s183, 16
          %s185 = scalar_lea.vmem [#allocation5], %s184
          %s186 = smul.u32 2, %s17
          %s188 = ssub.s32 256, 256
          %189 = vsyncadd %s182, %s188
          %s190 = smul.addr %s186, 128
          %s191 = scalar_lea.hbm %s1, %s190
          %s193 = sshll.u32 %s185, 4
          %s194 = int_to_ptr.vmem [resolvable:$true] %s193
          %196 = dma.hbm_to_vmem [thread:$0]  %s191, 256, %s194, %s182
        $region32: #{tpu_custom_call.1} parent=27 // pred_fallthru
          _
      $region28: #{tpu_custom_call.1} parent=5 // pred_fallthru
        _
      %p197 = scmp.le.s32.totalorder 1, %s17
      %p198 = scmp.lt.s32.totalorder %s17, 3
      %p199 = pnand %p197, %p198
      %p200 = pneg %p199
      // Predicated region
      $region33: #{tpu_custom_call.1} parent=5 // pred_check
        _
      $region34: #{tpu_custom_call.1} parent=5 // pred_check_branch
        %202 = sbr.rel (%p199) target = $region36
      $region35: #{tpu_custom_call.1} parent=5 // pred_region
        %s203 = ssub.s32 %s17, 1
        // Predicated region
        $region37: #{tpu_custom_call.1} parent=35 // pred_check
          %p204 = pneg %p38
        $region38: #{tpu_custom_call.1} parent=35 // pred_check_branch
          %206 = sbr.rel (%p204) target = $region40
        $region39: #{tpu_custom_call.1} parent=35 // pred_region
          %207 = dma.done [#allocation3], 512
        $region40: #{tpu_custom_call.1} parent=35 // pred_fallthru
          _
        %s208 = sand.u32 %s22, 1
        %s209 = scalar_lea.sflag [#allocation6], %s208
        %s210 = sand.u32 %s51, 1
        %s211 = smul.addr %s210, 16
        %s212 = scalar_lea.vmem [#allocation5], %s211
        // Predicated region
        $region41: #{tpu_custom_call.1} parent=35 // pred_check
          %p213 = pneg %p64
        $region42: #{tpu_custom_call.1} parent=35 // pred_check_branch
          %215 = sbr.rel (%p213) target = $region44
        $region43: #{tpu_custom_call.1} parent=35 // pred_region
          %216 = dma.done %s209, 256
        $region44: #{tpu_custom_call.1} parent=35 // pred_fallthru
          _
        // Predicated region
        $region45: #{tpu_custom_call.1} parent=35 // pred_check
          %p217 = pneg %p85
        $region46: #{tpu_custom_call.1} parent=35 // pred_check_branch
          %219 = sbr.rel (%p217) target = $region48
        $region47: #{tpu_custom_call.1} parent=35 // pred_region
          %220 = dma.done [#allocation6], 128
        $region48: #{tpu_custom_call.1} parent=35 // pred_fallthru
          _
        %p221 = pneg %p38
        %p222 = pneg %p35
        %s223 = sand.u32 %s22, 1
        %s224 = scalar_lea.sflag [#allocation6], %s223
        %s225 = sand.u32 %s51, 1
        %s226 = smul.addr %s225, 16
        %s227 = scalar_lea.vmem [#allocation5], %s226
        %p228 = pneg %p64
        %p229 = pneg %p61
        %p230 = pneg %p85
        %p231 = pneg %p82
        %p232 = pneg %p106
        %p233 = pneg %p103
        %p234 = pneg %p132
        %p235 = pneg %p129
        %s236 = sand.u32 %s119, 1
        %s237 = scalar_lea.sflag [#allocation4], %s236
        %s238 = sand.u32 %s119, 1
        %s239 = smul.addr %s238, 16
        %s240 = scalar_lea.vmem [#allocation8], %s239
        %s241 = smul.u32 2, %s22
        %s242 = smul.u32 2, %s22
        %v243 = vld [vmem:[#allocation2] sm:$0xff]
        %v244 = vld [vmem:[#allocation2 + $0x8] sm:$0xff]
        %v245 = vld [vmem:[#allocation2 + $0x10] sm:$0x1]
        %v246 = vld [vmem:[#allocation2 + $0x18] sm:$0x1]
        %v247 = vld [vmem:[#allocation7] sm:$0xff]
        %v248 = vld [vmem:[%s3] sm:$0xff]
        %v249 = vld [vmem:[%s212] sm:$0xff]
        %v250 = vld [vmem:[%s212 + $0x8] sm:$0xff]
        %251 = vrot.lane.b32.xlu0 %v249, 17
        %v252 = vpop.permute.xlu0 %251
        %253 = vrot.lane.b32.xlu0 %v250, 17
        %v254 = vpop.permute.xlu0 %253
        %v255 = vlaneseq
        %v256 = vand.u32 %v255, 127
        %vm257 = vcmp.lt.s32.totalorder %v256, 17
        %v258 = vsel %vm257, %v252, %v254
        %v259 = vsel %vm257, %v254, %v252
        %vm260 = vcmp.gt.f32.partialorder %v243, 0.5
        %vm261 = vcmp.gt.f32.partialorder %v244, 0.5
        %v262 = vsel %vm260, 1, 0
        %v263 = vsel %vm261, 1, 0
        %v264 = vlaneseq
        %v265 = vshrl.u32 %v264, 7
        %v266 = vsub.s32 0, %v265
        %v267 = vrot.slane %v262, %v266
        %v268 = vlaneseq
        %v269 = vshrl.u32 %v268, 7
        %v270 = vsub.s32 0, %v269
        %v271 = vrot.slane %v263, %v270
        %vm272 = vcmp.eq.s32.totalorder %v267, 1
        %vm273 = vcmp.eq.s32.totalorder %v271, 1
        %v274 = vsel %vm272, %v259, 0.0
        %v275 = vsel %vm273, %v258, 0.0
        %276 = vrot.lane.b32.xlu0 %v249, 16
        %v277 = vpop.permute.xlu0 %276
        %278 = vrot.lane.b32.xlu0 %v250, 16
        %v279 = vpop.permute.xlu0 %278
        %vm280 = vcmp.lt.s32.totalorder %v256, 16
        %v281 = vsel %vm280, %v277, %v279
        %v282 = vsel %vm280, %v279, %v277
        %v283 = vlaneseq
        %v284 = vshrl.u32 %v283, 7
        %v285 = vsub.s32 1, %v284
        %v286 = vrot.slane %v262, %v285
        %v287 = vlaneseq
        %v288 = vshrl.u32 %v287, 7
        %v289 = vsub.s32 1, %v288
        %v290 = vrot.slane %v263, %v289
        %vm291 = vcmp.eq.s32.totalorder %v286, 1
        %vm292 = vcmp.eq.s32.totalorder %v290, 1
        %v293 = vsel %vm291, %v282, 0.0
        %v294 = vsel %vm292, %v281, 0.0
        %295 = vrot.lane.b32.xlu0 %v249, 15
        %v296 = vpop.permute.xlu0 %295
        %297 = vrot.lane.b32.xlu0 %v250, 15
        %v298 = vpop.permute.xlu0 %297
        %vm299 = vcmp.lt.s32.totalorder %v256, 15
        %v300 = vsel %vm299, %v296, %v298
        %v301 = vsel %vm299, %v298, %v296
        %v302 = vlaneseq
        %v303 = vshrl.u32 %v302, 7
        %v304 = vsub.s32 2, %v303
        %v305 = vrot.slane %v262, %v304
        %v306 = vlaneseq
        %v307 = vshrl.u32 %v306, 7
        %v308 = vsub.s32 2, %v307
        %v309 = vrot.slane %v263, %v308
        %vm310 = vcmp.eq.s32.totalorder %v305, 1
        %vm311 = vcmp.eq.s32.totalorder %v309, 1
        %v312 = vsel %vm310, %v301, 0.0
        %v313 = vsel %vm311, %v300, 0.0
        %314 = vrot.lane.b32.xlu0 %v249, 1
        %v315 = vpop.permute.xlu0 %314
        %316 = vrot.lane.b32.xlu0 %v250, 1
        %v317 = vpop.permute.xlu0 %316
        %vm318 = vcmp.lt.s32.totalorder %v256, 1
        %v319 = vsel %vm318, %v315, %v317
        %v320 = vsel %vm318, %v317, %v315
        %v321 = vlaneseq
        %v322 = vshrl.u32 %v321, 7
        %v323 = vsub.s32 3, %v322
        %v324 = vrot.slane %v262, %v323
        %v325 = vlaneseq
        %v326 = vshrl.u32 %v325, 7
        %v327 = vsub.s32 3, %v326
        %v328 = vrot.slane %v263, %v327
        %vm329 = vcmp.eq.s32.totalorder %v324, 1
        %vm330 = vcmp.eq.s32.totalorder %v328, 1
        %v331 = vsel %vm329, %v320, 0.0
        %v332 = vsel %vm330, %v319, 0.0
        %v333 = vlaneseq
        %v334 = vshrl.u32 %v333, 7
        %v335 = vsub.s32 4, %v334
        %v336 = vrot.slane %v262, %v335
        %v337 = vlaneseq
        %v338 = vshrl.u32 %v337, 7
        %v339 = vsub.s32 4, %v338
        %v340 = vrot.slane %v263, %v339
        %vm341 = vcmp.eq.s32.totalorder %v336, 1
        %vm342 = vcmp.eq.s32.totalorder %v340, 1
        %v343 = vsel %vm341, %v249, 0.0
        %v344 = vsel %vm342, %v250, 0.0
        %345 = vrot.lane.b32.xlu0 %v249, 127
        %v346 = vpop.permute.xlu0 %345
        %347 = vrot.lane.b32.xlu0 %v250, 127
        %v348 = vpop.permute.xlu0 %347
        %vm349 = vcmp.lt.s32.totalorder %v256, 127
        %v350 = vsel %vm349, %v346, %v348
        %v351 = vsel %vm349, %v348, %v346
        %v352 = vlaneseq
        %v353 = vshrl.u32 %v352, 7
        %v354 = vsub.s32 5, %v353
        %v355 = vrot.slane %v262, %v354
        %v356 = vlaneseq
        %v357 = vshrl.u32 %v356, 7
        %v358 = vsub.s32 5, %v357
        %v359 = vrot.slane %v263, %v358
        %vm360 = vcmp.eq.s32.totalorder %v355, 1
        %vm361 = vcmp.eq.s32.totalorder %v359, 1
        %v362 = vsel %vm360, %v350, 0.0
        %v363 = vsel %vm361, %v351, 0.0
        %364 = vrot.lane.b32.xlu0 %v249, 113
        %v365 = vpop.permute.xlu0 %364
        %366 = vrot.lane.b32.xlu0 %v250, 113
        %v367 = vpop.permute.xlu0 %366
        %vm368 = vcmp.lt.s32.totalorder %v256, 113
        %v369 = vsel %vm368, %v365, %v367
        %v370 = vsel %vm368, %v367, %v365
        %v371 = vlaneseq
        %v372 = vshrl.u32 %v371, 7
        %v373 = vsub.s32 6, %v372
        %v374 = vrot.slane %v262, %v373
        %v375 = vlaneseq
        %v376 = vshrl.u32 %v375, 7
        %v377 = vsub.s32 6, %v376
        %v378 = vrot.slane %v263, %v377
        %vm379 = vcmp.eq.s32.totalorder %v374, 1
        %vm380 = vcmp.eq.s32.totalorder %v378, 1
        %v381 = vsel %vm379, %v369, 0.0
        %v382 = vsel %vm380, %v370, 0.0
        %383 = vrot.lane.b32.xlu0 %v249, 112
        %v384 = vpop.permute.xlu0 %383
        %385 = vrot.lane.b32.xlu0 %v250, 112
        %v386 = vpop.permute.xlu0 %385
        %vm387 = vcmp.lt.s32.totalorder %v256, 112
        %v388 = vsel %vm387, %v384, %v386
        %v389 = vsel %vm387, %v386, %v384
        %v390 = vlaneseq
        %v391 = vshrl.u32 %v390, 7
        %v392 = vsub.s32 7, %v391
        %v393 = vrot.slane %v262, %v392
        %v394 = vlaneseq
        %v395 = vshrl.u32 %v394, 7
        %v396 = vsub.s32 7, %v395
        %v397 = vrot.slane %v263, %v396
        %vm398 = vcmp.eq.s32.totalorder %v393, 1
        %vm399 = vcmp.eq.s32.totalorder %v397, 1
        %v400 = vsel %vm398, %v388, 0.0
        %v401 = vsel %vm399, %v389, 0.0
        %402 = vrot.lane.b32.xlu0 %v249, 111
        %v403 = vpop.permute.xlu0 %402
        %404 = vrot.lane.b32.xlu0 %v250, 111
        %v405 = vpop.permute.xlu0 %404
        %vm406 = vcmp.lt.s32.totalorder %v256, 111
        %v407 = vsel %vm406, %v403, %v405
        %v408 = vsel %vm406, %v405, %v403
        %vm409 = vcmp.gt.f32.partialorder %v245, 0.5
        %vm410 = vcmp.gt.f32.partialorder %v246, 0.5
        %v411 = vsel %vm409, 1, 0
        %v412 = vsel %vm410, 1, 0
        %v413 = vlaneseq
        %v414 = vshrl.u32 %v413, 7
        %v415 = vsub.s32 0, %v414
        %v416 = vrot.slane %v411, %v415
        %v417 = vlaneseq
        %v418 = vshrl.u32 %v417, 7
        %v419 = vsub.s32 0, %v418
        %v420 = vrot.slane %v412, %v419
        %vm421 = vcmp.eq.s32.totalorder %v416, 1
        %vm422 = vcmp.eq.s32.totalorder %v420, 1
        %v423 = vsel %vm421, %v407, 0.0
        %v424 = vsel %vm422, %v408, 0.0
        %vm425 = vcmask 588800
        %v427 = vsel %vm425, %v247, 0
        %429 = vmatprep.subr.mxu0 %v275
        %430 = vmatpush1.msra.mxu0 %v274
        %431 = vmatprep.subr.mxu0 %v294
        %432 = vmatpush1.msra.mxu0 %v293
        %433 = vmatprep.subr.mxu0 %v313
        %434 = vmatpush1.msra.mxu0 %v312
        %435 = vmatprep.subr.mxu0 %v332
        %436 = vmatpush1.msra.mxu0 %v331
        %437 = vmatprep.subr.mxu0 %v344
        %438 = vmatpush1.msra.mxu0 %v343
        %439 = vmatprep.subr.mxu0 %v363
        %440 = vmatpush1.msra.mxu0 %v362
        %441 = vmatprep.subr.mxu0 %v382
        %442 = vmatpush1.msra.mxu0 %v381
        %443 = vmatprep.subr.mxu0 %v401
        %444 = vmatpush1.msra.mxu0 %v400
        %445 = vmatprep.subr.mxu0 %v424
        %446 = vmatpush1.msra.mxu0 %v423
        %447 = vmatprep.subr.mxu0 0.0
        %448 = vmatpush1.msra.mxu0 0.0
        %449 = vmatprep.subr.mxu0 0.0
        %450 = vmatpush1.msra.mxu0 0.0
        %451 = vmatprep.subr.mxu0 0.0
        %452 = vmatpush1.msra.mxu0 0.0
        %453 = vmatprep.subr.mxu0 0.0
        %454 = vmatpush1.msra.mxu0 0.0
        %455 = vmatprep.subr.mxu0 0.0
        %456 = vmatpush1.msra.mxu0 0.0
        %457 = vmatprep.subr.mxu0 0.0
        %458 = vmatpush1.msra.mxu0 0.0
        %459 = vmatprep.subr.mxu0 0.0
        %460 = vmatpush1.msra.mxu0 0.0
        %461 = vmatprep.subr.mxu0 0.0
        %462 = vmatpush1.msra.mxu0 0.0
        %463 = vmatprep.subr.mxu0 0.0
        %464 = vmatpush1.msra.mxu0 0.0
        %465 = vmatprep.subr.mxu0 0.0
        %466 = vmatpush1.msra.mxu0 0.0
        %467 = vmatprep.subr.mxu0 0.0
        %468 = vmatpush1.msra.mxu0 0.0
        %469 = vmatprep.subr.mxu0 0.0
        %470 = vmatpush1.msra.mxu0 0.0
        %471 = vmatprep.subr.mxu0 0.0
        %472 = vmatpush1.msra.mxu0 0.0
        %473 = vmatprep.subr.mxu0 0.0
        %474 = vmatpush1.msra.mxu0 0.0
        %475 = vmatprep.subr.mxu0 0.0
        %476 = vmatpush1.msra.mxu0 0.0
        %477 = vmatprep.subr.mxu0 0.0
        %478 = vmatpush1.msra.mxu0 0.0
        %479 = vmatprep.subr.mxu0 0.0
        %480 = vmatpush1.msra.mxu0 0.0
        %481 = vmatprep.subr.mxu0 0.0
        %482 = vmatpush1.msra.mxu0 0.0
        %483 = vmatprep.subr.mxu0 0.0
        %484 = vmatpush1.msra.mxu0 0.0
        %485 = vmatprep.subr.mxu0 0.0
        %486 = vmatpush1.msra.mxu0 0.0
        %487 = vmatprep.subr.mxu0 0.0
        %488 = vmatpush1.msra.mxu0 0.0
        %489 = vmatprep.subr.mxu0 0.0
        %490 = vmatpush1.msra.mxu0 0.0
        %491 = vmatprep.subr.mxu0 0.0
        %492 = vmatpush1.msra.mxu0 0.0
        %493 = vmatprep.mubr.f32.mxu0 0.0
        %494 = vmatmul.mubr.f32.gmra.mrb[0].mxu0 %v427
        %v495 = vpop.f32.mrb[0].mxu0
        %v496 = vadd.f32 0.0, %v495
        %v497 = vpop.f32.mrb[0].mxu0
        %v498 = vadd.f32 0.0, %v497
        %499 = vdwg.mxu0
        %v500 = vadd.f32 %v496, %v498
        %501 = vadd.xlane.f32.xlu0 %v500
        %v502 = vpop.xlane.xlu0 %501
        %v503 = vmul.f32 %v502, 0.00390625
        %v504 = vsub.f32 %v496, %v503
        %v505 = vsub.f32 %v498, %v503
        %v506 = vmul.f32 %v504, %v504
        %v507 = vmul.f32 %v505, %v505
        %v508 = vadd.f32 %v506, %v507
        %509 = vadd.xlane.f32.xlu0 %v508
        %v510 = vpop.xlane.xlu0 %509
        %v511 = vmul.f32 %v510, 0.00390625
        %v512 = vadd.f32 %v511, 1e-05
        %v513 = vrsqrt.pop %v512
        %v514 = vmul.f32 %v504, %v513
        %v515 = vmul.f32 %v505, %v513
        %v516 = vmax.f32 %v514, 0.0
        %v517 = vmax.f32 %v515, 0.0
        %518 = vrot.lane.b32.xlu0 %v516, 17
        %v519 = vpop.permute.xlu0 %518
        %520 = vrot.lane.b32.xlu0 %v517, 17
        %v521 = vpop.permute.xlu0 %520
        %v522 = vsel %vm257, %v519, %v521
        %v523 = vsel %vm257, %v521, %v519
        %v524 = vsel %vm272, %v523, 0.0
        %v525 = vsel %vm273, %v522, 0.0
        %526 = vrot.lane.b32.xlu0 %v516, 16
        %v527 = vpop.permute.xlu0 %526
        %528 = vrot.lane.b32.xlu0 %v517, 16
        %v529 = vpop.permute.xlu0 %528
        %v530 = vsel %vm280, %v527, %v529
        %v531 = vsel %vm280, %v529, %v527
        %v532 = vsel %vm291, %v531, 0.0
        %v533 = vsel %vm292, %v530, 0.0
        %534 = vrot.lane.b32.xlu0 %v516, 15
        %v535 = vpop.permute.xlu0 %534
        %536 = vrot.lane.b32.xlu0 %v517, 15
        %v537 = vpop.permute.xlu0 %536
        %v538 = vsel %vm299, %v535, %v537
        %v539 = vsel %vm299, %v537, %v535
        %v540 = vsel %vm310, %v539, 0.0
        %v541 = vsel %vm311, %v538, 0.0
        %542 = vrot.lane.b32.xlu0 %v516, 1
        %v543 = vpop.permute.xlu0 %542
        %544 = vrot.lane.b32.xlu0 %v517, 1
        %v545 = vpop.permute.xlu0 %544
        %v546 = vsel %vm318, %v543, %v545
        %v547 = vsel %vm318, %v545, %v543
        %v548 = vsel %vm329, %v547, 0.0
        %v549 = vsel %vm330, %v546, 0.0
        %v550 = vsel %vm341, %v516, 0.0
        %v551 = vsel %vm342, %v517, 0.0
        %552 = vrot.lane.b32.xlu0 %v516, 127
        %v553 = vpop.permute.xlu0 %552
        %554 = vrot.lane.b32.xlu0 %v517, 127
        %v555 = vpop.permute.xlu0 %554
        %v556 = vsel %vm349, %v553, %v555
        %v557 = vsel %vm349, %v555, %v553
        %v558 = vsel %vm360, %v556, 0.0
        %v559 = vsel %vm361, %v557, 0.0
        %560 = vrot.lane.b32.xlu0 %v516, 113
        %v561 = vpop.permute.xlu0 %560
        %562 = vrot.lane.b32.xlu0 %v517, 113
        %v563 = vpop.permute.xlu0 %562
        %v564 = vsel %vm368, %v561, %v563
        %v565 = vsel %vm368, %v563, %v561
        %v566 = vsel %vm379, %v564, 0.0
        %v567 = vsel %vm380, %v565, 0.0
        %568 = vrot.lane.b32.xlu0 %v516, 112
        %v569 = vpop.permute.xlu0 %568
        %570 = vrot.lane.b32.xlu0 %v517, 112
        %v571 = vpop.permute.xlu0 %570
        %v572 = vsel %vm387, %v569, %v571
        %v573 = vsel %vm387, %v571, %v569
        %v574 = vsel %vm398, %v572, 0.0
        %v575 = vsel %vm399, %v573, 0.0
        %576 = vrot.lane.b32.xlu0 %v516, 111
        %v577 = vpop.permute.xlu0 %576
        %578 = vrot.lane.b32.xlu0 %v517, 111
        %v579 = vpop.permute.xlu0 %578
        %v580 = vsel %vm406, %v577, %v579
        %v581 = vsel %vm406, %v579, %v577
        %v582 = vsel %vm421, %v580, 0.0
        %v583 = vsel %vm422, %v581, 0.0
        %v585 = vsel %vm425, %v248, 0
        %587 = vmatprep.subr.mxu0 %v525
        %588 = vmatpush1.msra.mxu0 %v524
        %589 = vmatprep.subr.mxu0 %v533
        %590 = vmatpush1.msra.mxu0 %v532
        %591 = vmatprep.subr.mxu0 %v541
        %592 = vmatpush1.msra.mxu0 %v540
        %593 = vmatprep.subr.mxu0 %v549
        %594 = vmatpush1.msra.mxu0 %v548
        %595 = vmatprep.subr.mxu0 %v551
        %596 = vmatpush1.msra.mxu0 %v550
        %597 = vmatprep.subr.mxu0 %v559
        %598 = vmatpush1.msra.mxu0 %v558
        %599 = vmatprep.subr.mxu0 %v567
        %600 = vmatpush1.msra.mxu0 %v566
        %601 = vmatprep.subr.mxu0 %v575
        %602 = vmatpush1.msra.mxu0 %v574
        %603 = vmatprep.subr.mxu0 %v583
        %604 = vmatpush1.msra.mxu0 %v582
        %605 = vmatprep.subr.mxu0 0.0
        %606 = vmatpush1.msra.mxu0 0.0
        %607 = vmatprep.subr.mxu0 0.0
        %608 = vmatpush1.msra.mxu0 0.0
        %609 = vmatprep.subr.mxu0 0.0
        %610 = vmatpush1.msra.mxu0 0.0
        %611 = vmatprep.subr.mxu0 0.0
        %612 = vmatpush1.msra.mxu0 0.0
        %613 = vmatprep.subr.mxu0 0.0
        %614 = vmatpush1.msra.mxu0 0.0
        %615 = vmatprep.subr.mxu0 0.0
        %616 = vmatpush1.msra.mxu0 0.0
        %617 = vmatprep.subr.mxu0 0.0
        %618 = vmatpush1.msra.mxu0 0.0
        %619 = vmatprep.subr.mxu0 0.0
        %620 = vmatpush1.msra.mxu0 0.0
        %621 = vmatprep.subr.mxu0 0.0
        %622 = vmatpush1.msra.mxu0 0.0
        %623 = vmatprep.subr.mxu0 0.0
        %624 = vmatpush1.msra.mxu0 0.0
        %625 = vmatprep.subr.mxu0 0.0
        %626 = vmatpush1.msra.mxu0 0.0
        %627 = vmatprep.subr.mxu0 0.0
        %628 = vmatpush1.msra.mxu0 0.0
        %629 = vmatprep.subr.mxu0 0.0
        %630 = vmatpush1.msra.mxu0 0.0
        %631 = vmatprep.subr.mxu0 0.0
        %632 = vmatpush1.msra.mxu0 0.0
        %633 = vmatprep.subr.mxu0 0.0
        %634 = vmatpush1.msra.mxu0 0.0
        %635 = vmatprep.subr.mxu0 0.0
        %636 = vmatpush1.msra.mxu0 0.0
        %637 = vmatprep.subr.mxu0 0.0
        %638 = vmatpush1.msra.mxu0 0.0
        %639 = vmatprep.subr.mxu0 0.0
        %640 = vmatpush1.msra.mxu0 0.0
        %641 = vmatprep.subr.mxu0 0.0
        %642 = vmatpush1.msra.mxu0 0.0
        %643 = vmatprep.subr.mxu0 0.0
        %644 = vmatpush1.msra.mxu0 0.0
        %645 = vmatprep.subr.mxu0 0.0
        %646 = vmatpush1.msra.mxu0 0.0
        %647 = vmatprep.subr.mxu0 0.0
        %648 = vmatpush1.msra.mxu0 0.0
        %649 = vmatprep.subr.mxu0 0.0
        %650 = vmatpush1.msra.mxu0 0.0
        %651 = vmatprep.mubr.f32.mxu0 0.0
        %652 = vmatmul.mubr.f32.gmra.mrb[0].mxu0 %v585
        %v653 = vpop.f32.mrb[0].mxu0
        %v654 = vadd.f32 0.0, %v653
        %v655 = vpop.f32.mrb[0].mxu0
        %v656 = vadd.f32 0.0, %v655
        %657 = vdwg.mxu0
        %v658 = vadd.f32 %v654, %v656
        %659 = vadd.xlane.f32.xlu0 %v658
        %v660 = vpop.xlane.xlu0 %659
        %v661 = vmul.f32 %v660, 0.00390625
        %v662 = vsub.f32 %v654, %v661
        %v663 = vsub.f32 %v656, %v661
        %v664 = vmul.f32 %v662, %v662
        %v665 = vmul.f32 %v663, %v663
        %v666 = vadd.f32 %v664, %v665
        %667 = vadd.xlane.f32.xlu0 %v666
        %v668 = vpop.xlane.xlu0 %667
        %v669 = vmul.f32 %v668, 0.00390625
        %v670 = vadd.f32 %v669, 1e-05
        %v671 = vrsqrt.pop %v670
        %v672 = vmul.f32 %v662, %v671
        %v673 = vmul.f32 %v663, %v671
        %v674 = vmax.f32 %v672, 0.0
        %v675 = vmax.f32 %v673, 0.0
        %676 = vst [vmem:[%s240] sm:$0xff] %v674
        %677 = vst [vmem:[%s240 + $0x8] sm:$0xff] %v675
        %s678 = sand.u32 %s119, 1
        %s679 = scalar_lea.sflag [#allocation4], %s678
        %s680 = sand.u32 %s119, 1
        %s681 = smul.addr %s680, 16
        %s682 = scalar_lea.vmem [#allocation8], %s681
        // Predicated region
        $region49: #{tpu_custom_call.1} parent=35 // pred_check
          %p683 = pneg %p129
        $region50: #{tpu_custom_call.1} parent=35 // pred_check_branch
          %685 = sbr.rel (%p683) target = $region52
        $region51: #{tpu_custom_call.1} parent=35 // pred_region
          %s686 = smul.u32 2, %s22
          %s688 = ssub.s32 256, 256
          %689 = vsyncadd %s679, %s688
          %s690 = smul.addr %s686, 128
          %s691 = scalar_lea.hbm %s4, %s690
          %s693 = sshll.u32 %s682, 4
          %s694 = int_to_ptr.vmem [resolvable:$true] %s693
          %696 = dma.vmem_to_hbm [thread:$0]  %s694, 256, %s691, %s679
        $region52: #{tpu_custom_call.1} parent=35 // pred_fallthru
          _
      $region36: #{tpu_custom_call.1} parent=5 // pred_fallthru
        _
      %p697 = scmp.le.s32.totalorder 2, %s17
      // Predicated region
      $region53: #{tpu_custom_call.1} parent=5 // pred_check
        %p698 = pneg %p697
      $region54: #{tpu_custom_call.1} parent=5 // pred_check_branch
        %700 = sbr.rel (%p698) target = $region56
      $region55: #{tpu_custom_call.1} parent=5 // pred_region
        %s701 = ssub.s32 %s17, 2
        // Predicated region
        $region57: #{tpu_custom_call.1} parent=55 // pred_check
          %p702 = pneg %p135
        $region58: #{tpu_custom_call.1} parent=55 // pred_check_branch
          %704 = sbr.rel (%p702) target = $region60
        $region59: #{tpu_custom_call.1} parent=55 // pred_region
          %s705 = sand.u32 %s120, 1
          %s706 = scalar_lea.sflag [#allocation4], %s705
          %s707 = sand.u32 %s120, 1
          %s708 = smul.addr %s707, 16
          %s709 = scalar_lea.vmem [#allocation8], %s708
          %710 = dma.done %s706, 256
        $region60: #{tpu_custom_call.1} parent=55 // pred_fallthru
          _
      $region56: #{tpu_custom_call.1} parent=5 // pred_fallthru
        _
    $region6: #{tpu_custom_call.1} parent=1 // loop_footer
      %s21 = sadd.s32 1, %s17
    $region7: #{tpu_custom_call.1} parent=1 // loop_footer_branch
      %16 = sbr.rel target = $region3
    $region8: #{tpu_custom_call.1} parent=1 // loop_exit
      _
    %711 = vsyncpa [#allocation3], 1
    %s712 = scalar_lea.sflag [#allocation3], 1
    %713 = vsyncpa %s712, 1
    %714 = vsyncpa [#allocation6], 1
    %s715 = scalar_lea.sflag [#allocation6], 1
    %716 = vsyncpa %s715, 1
    %717 = vsyncpa [#allocation4], 1
    %s718 = scalar_lea.sflag [#allocation4], 1
    %719 = vsyncpa %s718, 1

</llo_original>
